<compile_context>
chip_gen: v5e
topology: v5e:2x2
jax: 0.10.0
libtpu: 0.0.40
codegen_flags: <defaults>
</compile_context>

<pallas_src>
import functools

import jax
import jax.numpy as jnp
from jax.experimental import pallas as pl
from jax.experimental.pallas import tpu as pltpu


def _round_up(x, m):
    return ((x + m - 1) // m) * m


def _encoder_kernel(ids_ref, table_ref, o_ref, *, bt, L_pad, L, V_pad, H, bias_row):
    # ids_ref:   (bt*L_pad, 1) int32 flattened token ids for this batch tile
    # table_ref: (V_pad, H)    pre-multiplied table: rows [0, V1) = emb @ W.T,
    #                          row `bias_row` = Linear bias, other padded rows = 0
    # o_ref:     (bt, H)       max-pooled output for this batch tile
    ids = ids_ref[...]                                                    # (bt*L_pad, 1)

    # Embedding gather + Linear + bias, all as ONE one-hot MXU matmul:
    # the `bias_row` column is forced to 1.0 for every token so the bias rides along.
    vocab_iota = jax.lax.broadcasted_iota(jnp.int32, (bt * L_pad, V_pad), 1)
    one_hot = jnp.logical_or(ids == vocab_iota,
                             vocab_iota == bias_row).astype(jnp.float32)  # (bt*L_pad, V_pad)
    y = jnp.dot(one_hot, table_ref[...],
                preferred_element_type=jnp.float32)                       # (bt*L_pad, H)

    # Mask padded sequence positions (only traced when L was actually padded).
    if L_pad != L:
        pos = jax.lax.broadcasted_iota(jnp.int32, (bt * L_pad, 1), 0) % L_pad
        y = jnp.where(pos < L, y, -jnp.inf)

    # Max-pool over the sequence axis (free sublane split: L_pad is a multiple of 8).
    o_ref[...] = jnp.max(y.reshape(bt, L_pad, H), axis=1)                 # (bt, H)


def sentence_encoder_forward(token_ids, embedding, weight, bias, *, rows_per_tile=256):
    """token_ids: (B, L) int; embedding: (V+1, H); weight: (H, H) PyTorch layout; bias: (H,)."""
    B, L = token_ids.shape
    V1, H = embedding.shape

    # --- static weight prep (wrapper side, weights are constants) ----------------------
    emb = embedding.astype(jnp.float32).at[0].set(0.0)        # nn.Embedding(padding_idx=0)
    table = jnp.dot(emb, weight.astype(jnp.float32).T)        # (V1, H): T[v] = emb[v] @ W.T
    V_pad = _round_up(V1 + 1, 8)                              # pad K, keep a spare bias row
    bias_row = V_pad - 1
    table_ext = jnp.zeros((V_pad, H), jnp.float32)
    table_ext = table_ext.at[:V1].set(table).at[bias_row].set(bias.astype(jnp.float32))

    # --- input prep ---------------------------------------------------------------------
    L_pad = _round_up(L, 8)                                   # keep reshape+max a sublane split
    bt = min(B, max(1, rows_per_tile // L_pad))               # sentences per grid step
    B_pad = _round_up(B, bt)
    ids = jnp.zeros((B_pad, L_pad), jnp.int32)
    ids = ids.at[:B, :L].set(token_ids.astype(jnp.int32))
    ids_flat = ids.reshape(B_pad * L_pad, 1)

    num_tiles = B_pad // bt
    kernel = functools.partial(_encoder_kernel, bt=bt, L_pad=L_pad, L=L,
                               V_pad=V_pad, H=H, bias_row=bias_row)

    cost = pl.CostEstimate(
        flops=2 * B_pad * L_pad * V_pad * H,
        transcendentals=0,
        bytes_accessed=(ids_flat.size * 4 + num_tiles * table_ext.size * 4 + B_pad * H * 4))

    out = pl.pallas_call(
        kernel,
        out_shape=jax.ShapeDtypeStruct((B_pad, H), jnp.float32),
        grid=(num_tiles,),
        in_specs=[
            pl.BlockSpec((bt * L_pad, 1), lambda i: (i, 0)),  # token ids (per batch tile)
            pl.BlockSpec((V_pad, H), lambda i: (0, 0)),       # fused table (VMEM-resident)
        ],
        out_specs=pl.BlockSpec((bt, H), lambda i: (i, 0)),
        compiler_params=pltpu.CompilerParams(
            dimension_semantics=("parallel",)),               # shard batch tiles across cores
        cost_estimate=cost,
    )(ids_flat, table_ext)
    return out[:B]


def _reference_forward(token_ids, embedding, weight, bias):
    emb = embedding.at[0].set(0.0)                            # padding_idx=0
    x = jnp.take(emb, token_ids, axis=0)                      # (B, L, H)
    y = jnp.einsum("blh,oh->blo", x, weight) + bias           # Linear: x @ W.T + b
    return jnp.max(y, axis=1)                                 # max over sequence


if __name__ == "__main__":
    # config: hidden_size=32, vocab_size=30 (+1 for padding), max_length=8
    hidden_size = 32
    vocab_size = 30
    max_length = 8
    batch = 2

    key = jax.random.PRNGKey(0)
    k_emb, k_w, k_b, k_ids = jax.random.split(key, 4)

    embedding = jax.random.normal(k_emb, (vocab_size + 1, hidden_size),
                                  dtype=jnp.float32) * 0.1
    weight = jax.random.normal(k_w, (hidden_size, hidden_size),
                               dtype=jnp.float32) * 0.1
    bias = jax.random.normal(k_b, (hidden_size,), dtype=jnp.float32) * 0.1

    token_ids = jax.random.randint(k_ids, (batch, max_length), 0,
                                   vocab_size + 1, dtype=jnp.int32)

    out = sentence_encoder_forward(token_ids, embedding, weight, bias)
    out = jax.block_until_ready(out)

    ref = _reference_forward(token_ids, embedding, weight, bias)
    assert out.shape == (batch, hidden_size), out.shape
    assert jnp.allclose(out, ref, atol=1e-5, rtol=1e-5), "mismatch vs reference"

    print("KERNEL_OK")
</pallas_src>

<mosaic_0001>
module attributes {stable_mosaic.version = 11 : i64} {
  func.func @_encoder_kernel(%arg0: i32, %arg1: memref<16x1xi32, #tpu.memory_space<vmem>>, %arg2: memref<32x32xf32, #tpu.memory_space<vmem>>, %arg3: memref<2x32xf32, #tpu.memory_space<vmem>>) attributes {dimension_semantics = [#tpu.dimension_semantics<parallel>], iteration_bounds = array<i64: 1>, scalar_prefetch = 0 : i64, scratch_operands = 0 : i64, tpu.core_type = #tpu.core_type<tc>, window_params = [{transform_indices = @transform_0, window_bounds = array<i64: 16, 1>}, {pipeline_mode = #tpu.pipeline_mode<synchronous>, transform_indices = @transform_1, window_bounds = array<i64: 32, 32>}, {transform_indices = @transform_2, window_bounds = array<i64: 2, 32>}]} {
    %c0 = arith.constant 0 : index
    %c0_0 = arith.constant 0 : index
    %0 = vector.load %arg1[%c0, %c0_0] : memref<16x1xi32, #tpu.memory_space<vmem>>, vector<16x1xi32>
    %1 = tpu.iota {dimensions = array<i32: 1>} : vector<16x32xi32>
    %2 = vector.broadcast %0 : vector<16x1xi32> to vector<16x32xi32>
    %3 = arith.cmpi eq, %2, %1 : vector<16x32xi32>
    %c31_i32 = arith.constant 31 : i32
    %4 = vector.broadcast %c31_i32 : i32 to vector<16x32xi32>
    %5 = arith.cmpi eq, %1, %4 : vector<16x32xi32>
    %6 = arith.ori %3, %5 : vector<16x32xi1>
    %7 = arith.extui %6 : vector<16x32xi1> to vector<16x32xi32>
    %8 = arith.sitofp %7 : vector<16x32xi32> to vector<16x32xf32>
    %c0_1 = arith.constant 0 : index
    %c0_2 = arith.constant 0 : index
    %9 = vector.load %arg2[%c0_1, %c0_2] : memref<32x32xf32, #tpu.memory_space<vmem>>, vector<32x32xf32>
    %cst = arith.constant dense<0.000000e+00> : vector<16x32xf32>
    %10 = tpu.matmul %8, %9, %cst {dimension_numbers = #tpu.dot_dimension_numbers<[1], [0], [0], [1], [0, 0, 1, 1], [], []>} : vector<16x32xf32>, vector<32x32xf32>, vector<16x32xf32> -> vector<16x32xf32>
    %11 = vector.shape_cast %10 : vector<16x32xf32> to vector<2x8x32xf32>
    %cst_3 = arith.constant dense<0xFF800000> : vector<2x32xf32>
    %12 = vector.multi_reduction <maximumf>, %11, %cst_3 [1] : vector<2x8x32xf32> to vector<2x32xf32>
    %c0_4 = arith.constant 0 : index
    %c0_5 = arith.constant 0 : index
    %13 = vector.load %arg3[%c0_4, %c0_5] : memref<2x32xf32, #tpu.memory_space<vmem>>, vector<2x32xf32>
    tpu.vector_store %arg3[%c0_4, %c0_5], %12 {strides = array<i32>} : memref<2x32xf32, #tpu.memory_space<vmem>>, vector<2x32xf32>,
    return
  }
  func.func @transform_0(%arg0: i32) -> (i32, i32) {
    %c0_i32 = arith.constant 0 : i32
    %c0_i32_0 = arith.constant 0 : i32
    return %arg0, %c0_i32 : i32, i32
  }
  func.func @transform_1(%arg0: i32) -> (i32, i32) {
    %c0_i32 = arith.constant 0 : i32
    %c0_i32_0 = arith.constant 0 : i32
    %c0_i32_1 = arith.constant 0 : i32
    return %c0_i32, %c0_i32_0 : i32, i32
  }
  func.func @transform_2(%arg0: i32) -> (i32, i32) {
    %c0_i32 = arith.constant 0 : i32
    %c0_i32_0 = arith.constant 0 : i32
    return %arg0, %c0_i32 : i32, i32
  }
}

</mosaic_0001>

<llo_original>
// kernel: tpu_custom_call.1
$region0: #{tpu_custom_call.1}
  #allocation0 [shape = 'u32[]', space=smem, size = 0x4, offset = 0x4, fixed_abs, tag = 'smem constant byte address 0x4 - core index']
  #allocation1 [shape = 'u32[72,128]{1,0:T(1,128)}', space=vmem, size = 0x9000, scoped, tag = 'internal scratch']
  %s0 = inlined_call_operand.vmem [shape: s32[16,1], index: 0, kind: input, shape index: {}]
  %s1 = inlined_call_operand.hbm [shape: f32[32,32], index: 1, kind: input, shape index: {}]
  %s2 = inlined_call_operand.hbm [shape: f32[2,32], index: 2, kind: output, shape index: {}]
  %s3 = sld [smem:[#allocation0]]
  $region22: #{tpu_custom_call.1} parent=0
    _
  %s5 = ssub.s32 1, %s3
  %s6 = scalar_select 0, %s5, %s3
  $region1: #{tpu_custom_call.1} parent=0
    #allocation2 [shape = 'u8[16384]{0}', space=vmem, size = 0x4000, scoped, tag = 'input window, operand 1, single buffered']
    #allocation3 [shape = 's32[1]{0}', space=sflag, size = 0x4, scoped, tag = 'scoped memory for tpu_custom_call.1']
    #allocation4 [shape = 's32[1]{0}', space=sflag, size = 0x4, scoped, tag = 'scoped memory for tpu_custom_call.1']
    #allocation5 [shape = 'u8[1024]{0}', space=vmem, size = 0x400, scoped, tag = 'output window, operand 0, single buffered']
    %7 = vsyncpa [#allocation3], 0
    %8 = vsyncpa [#allocation4], 0
    // Predicated region
    $region2: #{tpu_custom_call.1} parent=1 // pred_check
      _
    $region3: #{tpu_custom_call.1} parent=1 // pred_check_branch
      %10 = sbr.rel (0) target = $region5
    $region4: #{tpu_custom_call.1} parent=1 // pred_region
      _
    $region5: #{tpu_custom_call.1} parent=1 // pred_fallthru
      _
    // Predicated region
    $region6: #{tpu_custom_call.1} parent=1 // pred_check
      _
    $region7: #{tpu_custom_call.1} parent=1 // pred_check_branch
      %12 = sbr.rel (0) target = $region9
    $region8: #{tpu_custom_call.1} parent=1 // pred_region
      %14 = vsyncadd [#allocation3], 0
      %s15 = sshll.u32 %s1, 4
      %s16 = int_to_ptr.hbm [resolvable:$true] %s15
      %s17 = sshll.u32 [#allocation2], 4
      %s18 = int_to_ptr.vmem [resolvable:$true] %s17
      %23 = dma.hbm_to_vmem [thread:$0]  %s16, 512, %s18, [#allocation3], 128, 128, 8
    $region9: #{tpu_custom_call.1} parent=1 // pred_fallthru
      _
    // Predicated region
    $region10: #{tpu_custom_call.1} parent=1 // pred_check
      _
    $region11: #{tpu_custom_call.1} parent=1 // pred_check_branch
      %25 = sbr.rel (0) target = $region13
    $region12: #{tpu_custom_call.1} parent=1 // pred_region
      %27 = dma.done [#allocation3], 512
    $region13: #{tpu_custom_call.1} parent=1 // pred_fallthru
      _
    %v28 = vld [vmem:[%s0] sm:$0xff]
    %v29 = vld [vmem:[%s0 + $0x8] sm:$0xff]
    %v30 = vlaneseq
    %v31 = vand.u32 %v30, 127
    %32 = vset.pattern.permute.xlu0 0
    %33 = vperm.xlu0 %32, %v28
    %v34 = vpop.permute.xlu0 %33
    %35 = vset.pattern.permute.xlu0 0
    %36 = vperm.xlu0 %35, %v29
    %v37 = vpop.permute.xlu0 %36
    %vm38 = vcmp.eq.s32.totalorder %v34, %v31
    %vm39 = vcmp.eq.s32.totalorder %v37, %v31
    %vm40 = vcmp.eq.s32.totalorder %v31, 31
    %vm41 = vmor %vm38, %vm40
    %vm42 = vmor %vm39, %vm40
    %v43 = vsel %vm41, 1, 0
    %v44 = vsel %vm42, 1, 0
    %v45 = vcvt.s32.f32 %v43
    %v46 = vcvt.s32.f32 %v44
    %v47 = vld [vmem:[#allocation2] sm:$0xff]
    %v48 = vld [vmem:[#allocation2 + $0x8] sm:$0xff]
    %v49 = vld [vmem:[#allocation2 + $0x10] sm:$0xff]
    %v50 = vld [vmem:[#allocation2 + $0x18] sm:$0xff]
    %vm51 = vcmask 261120
    %v53 = vsel %vm51, %v45, 0
    %v56 = vsel %vm51, %v46, 0
    %58 = vmatpush.msra.mxu0 0.0
    %59 = vmatpush.msra.mxu0 0.0
    %60 = vmatpush.msra.mxu0 0.0
    %61 = vmatpush.msra.mxu0 0.0
    %62 = vmatpush.msra.mxu0 0.0
    %63 = vmatpush.msra.mxu0 0.0
    %64 = vmatpush.msra.mxu0 0.0
    %65 = vmatpush.msra.mxu0 0.0
    %66 = vmatpush.msra.mxu0 0.0
    %67 = vmatpush.msra.mxu0 0.0
    %68 = vmatpush.msra.mxu0 0.0
    %69 = vmatpush.msra.mxu0 0.0
    %70 = vmatpush.msra.mxu0 %v50
    %71 = vmatpush.msra.mxu0 %v49
    %72 = vmatpush.msra.mxu0 %v48
    %73 = vmatpush.msra.mxu0 %v47
    %74 = vmatmul.f32.gmra.mxu0 %v53
    %v75 = vpop.f32.mrf.mxu0
    %v76 = vadd.f32 0.0, %v75
    %77 = vmatmul.f32.gmra.mxu0 %v56
    %v78 = vpop.f32.mrf.mxu0
    %v79 = vadd.f32 0.0, %v78
    %80 = vdwg.mxu0
    %v81 = vsel %vm51, %v76, -inf
    %v82 = vrot.slane %v81, 4
    %v83 = vmax.f32 %v81, %v82
    %v84 = vrot.slane %v83, 2
    %v85 = vmax.f32 %v83, %v84
    %v86 = vrot.slane %v85, 1
    %v87 = vmax.f32 %v85, %v86
    %v88 = vsel %vm51, %v79, -inf
    %v89 = vrot.slane %v88, 4
    %v90 = vmax.f32 %v88, %v89
    %v91 = vrot.slane %v90, 2
    %v92 = vmax.f32 %v90, %v91
    %v93 = vrot.slane %v92, 1
    %v94 = vmax.f32 %v92, %v93
    %vm97 = vcmask 1041409
    %v98 = vsel %vm97, %v94, %v87
    %vm100 = vcmask 254976
    %101 = vst.msk [vmem:[#allocation5] sm:$0x3] %vm100, %v98
    // Predicated region
    $region14: #{tpu_custom_call.1} parent=1 // pred_check
      _
    $region15: #{tpu_custom_call.1} parent=1 // pred_check_branch
      %103 = sbr.rel (0) target = $region17
    $region16: #{tpu_custom_call.1} parent=1 // pred_region
      %105 = vsyncadd [#allocation4], 0
      %s107 = sshll.u32 [#allocation5], 4
      %s108 = int_to_ptr.vmem [resolvable:$true] %s107
      %s109 = sshll.u32 %s2, 4
      %s110 = int_to_ptr.hbm [resolvable:$true] %s109
      %112 = dma.vmem_to_hbm [thread:$0]  %s108, 32, %s110, [#allocation4]
    $region17: #{tpu_custom_call.1} parent=1 // pred_fallthru
      _
    // Predicated region
    $region18: #{tpu_custom_call.1} parent=1 // pred_check
      _
    $region19: #{tpu_custom_call.1} parent=1 // pred_check_branch
      %114 = sbr.rel (0) target = $region21
    $region20: #{tpu_custom_call.1} parent=1 // pred_region
      %116 = dma.done [#allocation4], 32
    $region21: #{tpu_custom_call.1} parent=1 // pred_fallthru
      _
    %117 = vsyncpa [#allocation3], 1
    %118 = vsyncpa [#allocation4], 1

</llo_original>
